<compile_context>
chip_gen: v7x
topology: tpu7x:2x2x1
jax: 0.10.0
libtpu: 0.0.40
codegen_flags: <defaults>
</compile_context>

<pallas_src>
import functools
import math

import jax
import jax.numpy as jnp
from jax import lax
from jax.experimental import pallas as pl
from jax.experimental.pallas import tpu as pltpu

R_EXP = 2.5                     # generalized-mean exponent (fixed in __init__)
LANES = 128
SMALL_INPUT_BYTES = 1 << 20     # below this, a Pallas launch is pure overhead
TARGET_BLOCK_BYTES = 8 << 20    # per-step input DMA target (Pallas double-buffers)
SLAB_F32_BYTES = 512 << 10      # max promoted-f32 slab live inside the kernel
MAX_SIZING_N = 256              # rows assumed resident per step when sizing tile_m


def _sublane_mult(dtype):
    """Native packed-sublane multiple: f32 -> 8, bf16/f16 -> 16, int8/fp8 -> 32."""
    size = jnp.dtype(dtype).itemsize
    if size >= 4:
        return 8
    if size == 2:
        return 16
    return 32


def _num_tensorcores():
    """Best-effort TensorCore count per device (v7x: 2, v5e/v6e: 1)."""
    try:
        dev = jax.devices()[0]
        for attr in ("num_cores", "core_count"):
            v = getattr(dev, attr, None)
            if isinstance(v, int) and v > 0:
                return v
        kind = str(getattr(dev, "device_kind", "")).lower()
        if "v7" in kind or "7x" in kind or "tpu7" in kind:
            return 2
    except Exception:
        pass
    return 1


def _vmem_capacity_bytes():
    try:
        info = pltpu.get_tpu_info()
        v = getattr(info, "vmem_capacity_bytes", None)
        if v:
            return int(v)
    except Exception:
        pass
    return 64 << 20             # v7x has the smallest physical VMEM -> conservative


def _slab_rows(tile_n, tile_m, sub):
    """Rows per inner accumulation step.

    A sublane-packed multiple that divides tile_n exactly (every step is a full
    slab) while keeping one promoted-f32 slab <= SLAB_F32_BYTES.
    """
    if tile_n <= sub or tile_n % sub != 0:
        return tile_n
    cap = max(sub, (SLAB_F32_BYTES // (tile_m * 4) // sub) * sub)
    rows = sub
    while rows * 2 <= min(cap, tile_n) and tile_n % (rows * 2) == 0:
        rows *= 2
    return rows


def _gen_mean_kernel(x_ref, o_ref, acc_ref, *, inv_n, inv_r, n_valid, tile_n,
                     slab_rows, mask_n):
    """Accumulate sum_i |x[i, :]|^r for one (tile_n, tile_m) block across the
    trailing reduction grid axis; apply mean and ^(1/r) on the last step."""
    ni = pl.program_id(1)

    @pl.when(ni == 0)
    def _init():
        acc_ref[...] = jnp.zeros_like(acc_ref)

    tile_m = x_ref.shape[1]
    if mask_n:
        # Hoisted once per block (JAX does not CSE broadcast_in_dim in loops).
        base_rows = lax.broadcasted_iota(jnp.int32, (slab_rows, tile_m), 0)

    def accumulate(start):
        xs = x_ref[pl.ds(start, slab_rows), :].astype(jnp.float32)
        # |x|^2.5 == (x*x) * sqrt(|x|): 2 VPU muls + 1 EUP sqrt (half the
        # transcendental load of exp(2.5*log|x|)) and exact at x == 0.
        ys = (xs * xs) * jnp.sqrt(jnp.abs(xs))
        if mask_n:
            rows = base_rows + (ni * tile_n + start)
            ys = jnp.where(rows < n_valid, ys, 0.0)
        acc_ref[...] += ys                 # vreg-wise VPU adds, no cross-sublane work

    n_slabs = tile_n // slab_rows
    if n_slabs == 1:
        accumulate(0)
    else:
        def body(s, carry):
            accumulate(pl.multiple_of(s * slab_rows, slab_rows))
            return carry
        lax.fori_loop(0, n_slabs, body, 0, unroll=min(n_slabs, 4))

    @pl.when(ni == pl.num_programs(1) - 1)
    def _finalize():
        # Single cross-sublane (XLU) collapse per output tile, then mean + ^(1/r).
        col = jnp.sum(acc_ref[...], axis=0, keepdims=True) * inv_n
        o_ref[...] = jnp.power(col, inv_r).astype(o_ref.dtype)


def generalized_mean(x, r=R_EXP, *, tile_m=None, tile_n=None, force_pallas=False):
    """Pallas equivalent of GeneralizedMean(dims=0).forward(x).

    Reduces over dim 0; returns an array of shape x.shape[1:].
    """
    if x.ndim < 2:
        return generalized_mean_ref(x, r)

    n = x.shape[0]
    rest_shape = x.shape[1:]
    m = math.prod(rest_shape)
    itemsize = jnp.dtype(x.dtype).itemsize

    # Small-input fast path: XLA fuses this trivially, skip kernel fixed costs.
    if not force_pallas and n * m * itemsize < SMALL_INPUT_BYTES:
        return generalized_mean_ref(x, r)

    x2 = x.reshape(n, m)                       # contiguous reshape: no copy, no pad
    sub = _sublane_mult(x.dtype)
    num_cores = _num_tensorcores()

    # --- tile_m: output lane axis (leading "parallel" grid axis) ------------
    if tile_m is None:
        n_for_sizing = min(max(sub, pl.cdiv(n, sub) * sub), MAX_SIZING_N)
        tm_cap = TARGET_BLOCK_BYTES // (n_for_sizing * itemsize)
        tm_cap = max(LANES, (tm_cap // LANES) * LANES)
        if m <= LANES:
            tile_m = m
        elif m <= tm_cap:
            tile_m = (m // LANES) * LANES      # one dense tile (+ ragged tail block)
        else:
            tile_m = tm_cap
        # Megacore (v7x): make sure each TensorCore gets at least one m-tile.
        while num_cores > 1 and pl.cdiv(m, tile_m) < num_cores and tile_m >= 1024:
            tile_m = max(512, ((tile_m // 2) // LANES) * LANES)
    tile_m = int(tile_m)

    # --- tile_n: reduction axis (trailing "arbitrary" grid axis) ------------
    if tile_n is None:
        cap_rows = TARGET_BLOCK_BYTES // max(1, tile_m * itemsize)
        cap_rows = max(sub, (cap_rows // sub) * sub)
        if n <= cap_rows:
            tile_n = n if (n <= sub or n % sub == 0) else (n // sub) * sub
        else:
            tile_n = cap_rows
    tile_n = max(1, min(int(tile_n), n))

    m_tiles = pl.cdiv(m, tile_m)
    n_tiles = pl.cdiv(n, tile_n)
    mask_n = (n % tile_n) != 0                 # last reduction block has garbage rows
    slab_rows = _slab_rows(tile_n, tile_m, sub)

    # --- VMEM limit sized from the actual tiles ------------------------------
    in_block = tile_n * tile_m * itemsize
    out_block = tile_m * itemsize
    slab_f32 = slab_rows * tile_m * 4
    vmem_need = 2 * in_block + 2 * out_block + 4 * slab_f32
    vmem_limit = int(min(max(2 * vmem_need + (2 << 20), 16 << 20),
                         (_vmem_capacity_bytes() * 3) // 4))

    cost = pl.CostEstimate(
        flops=4 * n * m + 3 * m,
        transcendentals=n * m + 2 * m,         # per-element sqrt + final pow
        bytes_accessed=n * m * itemsize + m * itemsize,
    )

    out2 = pl.pallas_call(
        functools.partial(
            _gen_mean_kernel,
            inv_n=1.0 / n, inv_r=1.0 / float(r), n_valid=n,
            tile_n=tile_n, slab_rows=slab_rows, mask_n=mask_n),
        out_shape=jax.ShapeDtypeStruct((1, m), x.dtype),
        grid_spec=pltpu.PrefetchScalarGridSpec(
            num_scalar_prefetch=0,
            grid=(m_tiles, n_tiles),                               # reduction last
            in_specs=[pl.BlockSpec((tile_n, tile_m), lambda mi, ni: (ni, mi))],
            out_specs=pl.BlockSpec((1, tile_m), lambda mi, ni: (0, mi)),
            scratch_shapes=[pltpu.VMEM((slab_rows, tile_m), jnp.float32)],
        ),
        compiler_params=pltpu.CompilerParams(
            dimension_semantics=("parallel", "arbitrary"),
            vmem_limit_bytes=vmem_limit,
        ),
        cost_estimate=cost,
    )(x2)
    return out2.reshape(rest_shape)


def generalized_mean_ref(x, r=R_EXP):
    """Pure-JAX reference; mirrors the PyTorch module exactly."""
    y = jnp.power(jnp.abs(x.astype(jnp.float32)), r)
    y = jnp.mean(y, axis=0)
    return jnp.power(y, 1.0 / r).astype(x.dtype)


if __name__ == "__main__":
    k0, k1 = jax.random.split(jax.random.PRNGKey(0))

    # 1) Module-scale NCHW input (2, 4, 16, 16): check both the small-input
    #    fast path and the forced Pallas path against the reference.
    x_small = jax.random.normal(k0, (2, 4, 16, 16), dtype=jnp.float32)
    ref_small = generalized_mean_ref(x_small)
    out_auto = jax.block_until_ready(generalized_mean(x_small))
    out_pallas = jax.block_until_ready(generalized_mean(x_small, force_pallas=True))
    assert out_auto.shape == out_pallas.shape == ref_small.shape == (4, 16, 16)
    assert jnp.allclose(out_auto, ref_small, atol=1e-4, rtol=1e-4), float(
        jnp.max(jnp.abs(out_auto - ref_small)))
    assert jnp.allclose(out_pallas, ref_small, atol=1e-4, rtol=1e-4), float(
        jnp.max(jnp.abs(out_pallas - ref_small)))

    # 2) Exercise the tiled path: multiple m-tiles with a ragged lane tail
    #    (M = 8*16*17 = 2176, tile_m = 2048), multiple reduction tiles with a
    #    masked ragged block (N = 150, tile_n = 128), and the in-kernel slab loop.
    x_big = jax.random.normal(k1, (150, 8, 16, 17), dtype=jnp.float32)
    ref_big = generalized_mean_ref(x_big)
    out_big = jax.block_until_ready(
        generalized_mean(x_big, tile_m=2048, tile_n=128, force_pallas=True))
    assert out_big.shape == ref_big.shape == (8, 16, 17)
    assert jnp.allclose(out_big, ref_big, atol=1e-4, rtol=1e-4), float(
        jnp.max(jnp.abs(out_big - ref_big)))

    print("KERNEL_OK")
</pallas_src>

<mosaic_0001>
module attributes {stable_mosaic.version = 11 : i64} {
  func.func @_gen_mean_kernel(%arg0: i32, %arg1: i32, %arg2: memref<2x1024xf32, #tpu.memory_space<vmem>>, %arg3: memref<1x1024xf32, #tpu.memory_space<vmem>>, %arg4: memref<2x1024xf32, #tpu.memory_space<vmem>>) attributes {dimension_semantics = [#tpu.dimension_semantics<parallel>, #tpu.dimension_semantics<arbitrary>], iteration_bounds = array<i64: 1, 1>, scalar_prefetch = 0 : i64, scratch_operands = 1 : i64, tpu.core_type = #tpu.core_type<tc>, window_params = [{transform_indices = @transform_0, window_bounds = array<i64: 2, 1024>}, {transform_indices = @transform_1, window_bounds = array<i64: 1, 1024>}]} {
    %c0_i32 = arith.constant 0 : i32
    %0 = arith.cmpi eq, %arg1, %c0_i32 : i32
    %1 = arith.extui %0 : i1 to i32
    %c0_i32_0 = arith.constant 0 : i32
    %2 = arith.cmpi ne, %1, %c0_i32_0 : i32
    scf.if %2 {
      %cst = arith.constant 0.000000e+00 : f32
      %14 = vector.broadcast %cst : f32 to vector<2x1024xf32>
      %c0_8 = arith.constant 0 : index
      %c0_9 = arith.constant 0 : index
      %15 = vector.load %arg4[%c0_8, %c0_9] : memref<2x1024xf32, #tpu.memory_space<vmem>>, vector<2x1024xf32>
      tpu.vector_store %arg4[%c0_8, %c0_9], %14 {strides = array<i32>} : memref<2x1024xf32, #tpu.memory_space<vmem>>, vector<2x1024xf32>,
    } else {
    }
    %c0 = arith.constant 0 : index
    %c0_1 = arith.constant 0 : index
    %3 = vector.load %arg2[%c0, %c0_1] : memref<2x1024xf32, #tpu.memory_space<vmem>>, vector<2x1024xf32>
    %4 = arith.mulf %3, %3 : vector<2x1024xf32>
    %5 = math.absf %3 : vector<2x1024xf32>
    %6 = math.sqrt %5 : vector<2x1024xf32>
    %7 = arith.mulf %4, %6 : vector<2x1024xf32>
    %c0_2 = arith.constant 0 : index
    %c0_3 = arith.constant 0 : index
    %8 = vector.load %arg4[%c0_2, %c0_3] : memref<2x1024xf32, #tpu.memory_space<vmem>>, vector<2x1024xf32>
    %9 = arith.addf %8, %7 : vector<2x1024xf32>
    %c0_4 = arith.constant 0 : index
    %c0_5 = arith.constant 0 : index
    %10 = vector.load %arg4[%c0_4, %c0_5] : memref<2x1024xf32, #tpu.memory_space<vmem>>, vector<2x1024xf32>
    tpu.vector_store %arg4[%c0_4, %c0_5], %9 {strides = array<i32>} : memref<2x1024xf32, #tpu.memory_space<vmem>>, vector<2x1024xf32>,
    %c0_i32_6 = arith.constant 0 : i32
    %11 = arith.cmpi eq, %arg1, %c0_i32_6 : i32
    %12 = arith.extui %11 : i1 to i32
    %c0_i32_7 = arith.constant 0 : i32
    %13 = arith.cmpi ne, %12, %c0_i32_7 : i32
    scf.if %13 {
      %c0_8 = arith.constant 0 : index
      %c0_9 = arith.constant 0 : index
      %14 = vector.load %arg4[%c0_8, %c0_9] : memref<2x1024xf32, #tpu.memory_space<vmem>>, vector<2x1024xf32>
      %cst = arith.constant dense<0.000000e+00> : vector<1024xf32>
      %15 = vector.multi_reduction <add>, %14, %cst [0] : vector<2x1024xf32> to vector<1024xf32>
      %16 = vector.shape_cast %15 : vector<1024xf32> to vector<1x1024xf32>
      %cst_10 = arith.constant 5.000000e-01 : f32
      %17 = vector.broadcast %cst_10 : f32 to vector<1x1024xf32>
      %18 = arith.mulf %16, %17 : vector<1x1024xf32>
      %cst_11 = arith.constant 4.000000e-01 : f32
      %19 = vector.broadcast %cst_11 : f32 to vector<1x1024xf32>
      %20 = math.powf %18, %19 : vector<1x1024xf32>
      %c0_12 = arith.constant 0 : index
      %c0_13 = arith.constant 0 : index
      %21 = vector.load %arg3[%c0_12, %c0_13] : memref<1x1024xf32, #tpu.memory_space<vmem>>, vector<1x1024xf32>
      tpu.vector_store %arg3[%c0_12, %c0_13], %20 {strides = array<i32>} : memref<1x1024xf32, #tpu.memory_space<vmem>>, vector<1x1024xf32>,
    } else {
    }
    return
  }
  func.func @transform_0(%arg0: i32, %arg1: i32) -> (i32, i32) {
    %c0_i32 = arith.constant 0 : i32
    return %arg1, %arg0 : i32, i32
  }
  func.func @transform_1(%arg0: i32, %arg1: i32) -> (i32, i32) {
    %c0_i32 = arith.constant 0 : i32
    %c0_i32_0 = arith.constant 0 : i32
    return %c0_i32, %arg0 : i32, i32
  }
}

</mosaic_0001>

<llo_original>
// kernel: tpu_custom_call.1
$region0: #{tpu_custom_call.1}
  #allocation0 [shape = 'u32[]', space=smem, size = 0x4, offset = 0x4, fixed_abs, tag = 'smem constant byte address 0x4 - core index']
  #allocation1 [shape = 'u32[144,128]{1,0:T(1,128)}', space=vmem, size = 0x12000, scoped, tag = 'internal scratch']
  #allocation2 [shape = 'f32[2,1024]{1,0:T(2,128)}', space=vmem, size = 0x2000, scoped, tag = 'scratch operand']
  %s0 = inlined_call_operand.hbm [shape: f32[2,1024], index: 0, kind: input, shape index: {}]
  %s1 = inlined_call_operand.hbm [shape: f32[1,1024], index: 1, kind: output, shape index: {}]
  %s2 = sld [smem:[#allocation0]]
  $region26: #{tpu_custom_call.1} parent=0
    _
  %s4 = ssub.s32 1, %s2
  %s5 = scalar_select 0, %s4, %s2
  $region1: #{tpu_custom_call.1} parent=0
    #allocation3 [shape = 'u8[8192]{0}', space=vmem, size = 0x2000, scoped, tag = 'input window, operand 0, single buffered']
    #allocation4 [shape = 's32[1]{0}', space=sflag, size = 0x4, scoped, tag = 'scoped memory for tpu_custom_call.1']
    #allocation5 [shape = 's32[1]{0}', space=sflag, size = 0x4, scoped, tag = 'scoped memory for tpu_custom_call.1']
    #allocation6 [shape = 'u8[4096]{0}', space=vmem, size = 0x1000, scoped, tag = 'output window, operand 0, single buffered']
    %6 = vsyncpa [#allocation4], 0
    %7 = vsyncpa [#allocation5], 0
    // Predicated region
    $region2: #{tpu_custom_call.1} parent=1 // pred_check
      _
    $region3: #{tpu_custom_call.1} parent=1 // pred_check_branch
      %9 = sbr.rel (0) target = $region5
    $region4: #{tpu_custom_call.1} parent=1 // pred_region
      %s11 = ssub.s32 256, 256
      %12 = vsyncadd [#allocation4], %s11
      %s14 = sshll.u32 [#allocation3], 4
      %s15 = int_to_ptr.vmem [resolvable:$true] %s14
      %17 = dma.hbm_to_vmem [thread:$0]  %s0, 256, %s15, [#allocation4]
    $region5: #{tpu_custom_call.1} parent=1 // pred_fallthru
      _
    // Predicated region
    $region6: #{tpu_custom_call.1} parent=1 // pred_check
      _
    $region7: #{tpu_custom_call.1} parent=1 // pred_check_branch
      %19 = sbr.rel (0) target = $region9
    $region8: #{tpu_custom_call.1} parent=1 // pred_region
      %20 = dma.done [#allocation4], 256
    $region9: #{tpu_custom_call.1} parent=1 // pred_fallthru
      _
    %p21 = scmp.eq.s32.totalorder 0, 0
    // Predicated region
    $region10: #{tpu_custom_call.1} parent=1 // pred_check
      %p22 = pneg %p21
    $region11: #{tpu_custom_call.1} parent=1 // pred_check_branch
      %24 = sbr.rel (%p22) target = $region13
    $region12: #{tpu_custom_call.1} parent=1 // pred_region
      %25 = vst [vmem:[#allocation2] sm:$0xff] 0.0
      %26 = vst [vmem:[#allocation2 + $0x8] sm:$0xff] 0.0
    $region13: #{tpu_custom_call.1} parent=1 // pred_fallthru
      _
    %v27 = vld [vmem:[#allocation3] sm:$0xff]
    %v28 = vld [vmem:[#allocation3 + $0x8] sm:$0xff]
    %v29 = vmul.f32 %v27, %v27
    %v30 = vmul.f32 %v28, %v28
    %v31 = vand.u32 2147483647, %v27
    %v32 = vand.u32 2147483647, %v28
    %v33 = vrsqrt.pop %v31
    %v34 = vmul.f32 %v31, %v33
    %vm35 = vcmp.eq.f32.partialorder %v31, inf
    %v36 = vsel %vm35, %v31, %v34
    %vm37 = vcmp.eq.f32.partialorder %v31, 0.0
    %v38 = vand.u32 %v31, 2147483648
    %v39 = vsel %vm37, %v38, %v36
    %v40 = vrsqrt.pop %v32
    %v41 = vmul.f32 %v32, %v40
    %vm42 = vcmp.eq.f32.partialorder %v32, inf
    %v43 = vsel %vm42, %v32, %v41
    %vm44 = vcmp.eq.f32.partialorder %v32, 0.0
    %v45 = vand.u32 %v32, 2147483648
    %v46 = vsel %vm44, %v45, %v43
    %v47 = vmul.f32 %v29, %v39
    %v48 = vmul.f32 %v30, %v46
    %v49 = vld [vmem:[#allocation2] sm:$0xff]
    %v50 = vld [vmem:[#allocation2 + $0x8] sm:$0xff]
    %v51 = vadd.f32 %v49, %v47
    %v52 = vadd.f32 %v50, %v48
    %53 = vst [vmem:[#allocation2] sm:$0xff] %v51
    %54 = vst [vmem:[#allocation2 + $0x8] sm:$0xff] %v52
    // Predicated region
    $region14: #{tpu_custom_call.1} parent=1 // pred_check
      %p55 = pneg %p21
    $region15: #{tpu_custom_call.1} parent=1 // pred_check_branch
      %57 = sbr.rel (%p55) target = $region17
    $region16: #{tpu_custom_call.1} parent=1 // pred_region
      %v58 = vld [vmem:[#allocation2] sm:$0xff]
      %v59 = vld [vmem:[#allocation2 + $0x8] sm:$0xff]
      %v62 = vcombine.high %v58, %v58
      %v64 = vunpack.c.l.s4 1983009808
      %v65 = vunpack.c.0.s8 %v64
      %v66 = vlaneseq
      %v67 = vshrl.u32 %v66, 7
      %v68 = vsub.s32 %v65, %v67
      %v69 = vrot.slane %v58, %v68
      %v71 = vunpack.c.l.s4 1983009808
      %v72 = vunpack.c.0.s8 %v71
      %v73 = vlaneseq
      %v74 = vshrl.u32 %v73, 7
      %v75 = vsub.s32 %v72, %v74
      %v76 = vrot.slane %v62, %v75
      %v77 = vcombine.high %v69, %v69
      %v78 = vcombine.high %v76, %v76
      %v79 = vcombine.high %v59, %v59
      %v81 = vunpack.c.l.s4 1983009808
      %v82 = vunpack.c.0.s8 %v81
      %v83 = vlaneseq
      %v84 = vshrl.u32 %v83, 7
      %v85 = vsub.s32 %v82, %v84
      %v86 = vrot.slane %v59, %v85
      %v88 = vunpack.c.l.s4 1983009808
      %v89 = vunpack.c.0.s8 %v88
      %v90 = vlaneseq
      %v91 = vshrl.u32 %v90, 7
      %v92 = vsub.s32 %v89, %v91
      %v93 = vrot.slane %v79, %v92
      %v94 = vcombine.high %v86, %v86
      %v95 = vcombine.high %v93, %v93
      %vm104 = vcmask 1041408
      %v105 = vsel %vm104, %v69, 0.0
      %v106 = vrot.slane %v105, 4
      %v107 = vadd.f32 %v105, %v106
      %v108 = vrot.slane %v107, 2
      %v109 = vadd.f32 %v107, %v108
      %v110 = vrot.slane %v109, 1
      %v111 = vadd.f32 %v109, %v110
      %v112 = vsel %vm104, %v77, 0.0
      %v113 = vrot.slane %v112, 4
      %v114 = vadd.f32 %v112, %v113
      %v115 = vrot.slane %v114, 2
      %v116 = vadd.f32 %v114, %v115
      %v117 = vrot.slane %v116, 1
      %v118 = vadd.f32 %v116, %v117
      %v119 = vsel %vm104, %v76, 0.0
      %v120 = vrot.slane %v119, 4
      %v121 = vadd.f32 %v119, %v120
      %v122 = vrot.slane %v121, 2
      %v123 = vadd.f32 %v121, %v122
      %v124 = vrot.slane %v123, 1
      %v125 = vadd.f32 %v123, %v124
      %v126 = vsel %vm104, %v78, 0.0
      %v127 = vrot.slane %v126, 4
      %v128 = vadd.f32 %v126, %v127
      %v129 = vrot.slane %v128, 2
      %v130 = vadd.f32 %v128, %v129
      %v131 = vrot.slane %v130, 1
      %v132 = vadd.f32 %v130, %v131
      %v133 = vsel %vm104, %v86, 0.0
      %v134 = vrot.slane %v133, 4
      %v135 = vadd.f32 %v133, %v134
      %v136 = vrot.slane %v135, 2
      %v137 = vadd.f32 %v135, %v136
      %v138 = vrot.slane %v137, 1
      %v139 = vadd.f32 %v137, %v138
      %v140 = vsel %vm104, %v94, 0.0
      %v141 = vrot.slane %v140, 4
      %v142 = vadd.f32 %v140, %v141
      %v143 = vrot.slane %v142, 2
      %v144 = vadd.f32 %v142, %v143
      %v145 = vrot.slane %v144, 1
      %v146 = vadd.f32 %v144, %v145
      %v147 = vsel %vm104, %v93, 0.0
      %v148 = vrot.slane %v147, 4
      %v149 = vadd.f32 %v147, %v148
      %v150 = vrot.slane %v149, 2
      %v151 = vadd.f32 %v149, %v150
      %v152 = vrot.slane %v151, 1
      %v153 = vadd.f32 %v151, %v152
      %v154 = vsel %vm104, %v95, 0.0
      %v155 = vrot.slane %v154, 4
      %v156 = vadd.f32 %v154, %v155
      %v157 = vrot.slane %v156, 2
      %v158 = vadd.f32 %v156, %v157
      %v159 = vrot.slane %v158, 1
      %v160 = vadd.f32 %v158, %v159
      %v161 = vmul.f32 %v111, 0.5
      %v162 = vmul.f32 %v118, 0.5
      %v163 = vmul.f32 %v125, 0.5
      %v164 = vmul.f32 %v132, 0.5
      %v165 = vmul.f32 %v139, 0.5
      %v166 = vmul.f32 %v146, 0.5
      %v167 = vmul.f32 %v153, 0.5
      %v168 = vmul.f32 %v160, 0.5
      %v169 = vpow.f32 %v161, 0.4
      %v170 = vpow.f32 %v162, 0.4
      %v171 = vpow.f32 %v163, 0.4
      %v172 = vpow.f32 %v164, 0.4
      %v173 = vpow.f32 %v165, 0.4
      %v174 = vpow.f32 %v166, 0.4
      %v175 = vpow.f32 %v167, 0.4
      %v176 = vpow.f32 %v168, 0.4
      %v185 = vcombine.low %v169, %v170
      %v186 = vcombine.low %v171, %v172
      %v187 = vcombine.low %v173, %v174
      %v188 = vcombine.low %v175, %v176
      %v190 = vunpack.c.l.s4 1966171168
      %v191 = vunpack.c.0.s8 %v190
      %v192 = vlaneseq
      %v193 = vshrl.u32 %v192, 7
      %v194 = vsub.s32 %v191, %v193
      %v195 = vrot.slane %v185, %v194
      %v197 = vunpack.c.l.s4 1966171168
      %v198 = vunpack.c.0.s8 %v197
      %v199 = vlaneseq
      %v200 = vshrl.u32 %v199, 7
      %v201 = vsub.s32 %v198, %v200
      %v202 = vrot.slane %v186, %v201
      %v204 = vunpack.c.l.s4 1966171168
      %v205 = vunpack.c.0.s8 %v204
      %v206 = vlaneseq
      %v207 = vshrl.u32 %v206, 7
      %v208 = vsub.s32 %v205, %v207
      %v209 = vrot.slane %v187, %v208
      %v211 = vunpack.c.l.s4 1966171168
      %v212 = vunpack.c.0.s8 %v211
      %v213 = vlaneseq
      %v214 = vshrl.u32 %v213, 7
      %v215 = vsub.s32 %v212, %v214
      %v216 = vrot.slane %v188, %v215
      %v217 = vcombine.low %v195, %v202
      %v218 = vcombine.low %v209, %v216
      %v220 = vunpack.c.l.s4 1966171168
      %v221 = vunpack.c.0.s8 %v220
      %v222 = vlaneseq
      %v223 = vshrl.u32 %v222, 7
      %v224 = vsub.s32 %v221, %v223
      %v225 = vrot.slane %v217, %v224
      %v227 = vunpack.c.l.s4 1966171168
      %v228 = vunpack.c.0.s8 %v227
      %v229 = vlaneseq
      %v230 = vshrl.u32 %v229, 7
      %v231 = vsub.s32 %v228, %v230
      %v232 = vrot.slane %v218, %v231
      %v233 = vcombine.low %v225, %v232
      %235 = vst [vmem:[#allocation6] sm:$0xff] %v233
    $region17: #{tpu_custom_call.1} parent=1 // pred_fallthru
      _
    // Predicated region
    $region18: #{tpu_custom_call.1} parent=1 // pred_check
      _
    $region19: #{tpu_custom_call.1} parent=1 // pred_check_branch
      %237 = sbr.rel (0) target = $region21
    $region20: #{tpu_custom_call.1} parent=1 // pred_region
      %s239 = ssub.s32 128, 128
      %240 = vsyncadd [#allocation5], %s239
      %s242 = sshll.u32 [#allocation6], 4
      %s243 = int_to_ptr.vmem [resolvable:$true] %s242
      %245 = dma.vmem_to_hbm [thread:$0]  %s243, 128, %s1, [#allocation5]
    $region21: #{tpu_custom_call.1} parent=1 // pred_fallthru
      _
    // Predicated region
    $region22: #{tpu_custom_call.1} parent=1 // pred_check
      _
    $region23: #{tpu_custom_call.1} parent=1 // pred_check_branch
      %247 = sbr.rel (0) target = $region25
    $region24: #{tpu_custom_call.1} parent=1 // pred_region
      %248 = dma.done [#allocation5], 128
    $region25: #{tpu_custom_call.1} parent=1 // pred_fallthru
      _
    %249 = vsyncpa [#allocation4], 1
    %250 = vsyncpa [#allocation5], 1

</llo_original>
